<compile_context>
chip_gen: v5e
topology: v5e:2x2
jax: 0.10.0
libtpu: 0.0.40
codegen_flags: <defaults>
</compile_context>

<pallas_src>
import functools

import jax
import jax.numpy as jnp
from jax.experimental import pallas as pl
from jax.experimental.pallas import tpu as pltpu


# ----------------------------------------------------------------------------
# Fused single-pass kernel (default path): one (tb, C, HW) block per grid step.
# ----------------------------------------------------------------------------
def _senet_v2_kernel(x_ref, w1t_ref, b1_ref, w2t_ref, b2_ref, o_ref, *, inv_hw):
    x = x_ref[...]                                            # (tb, C, HW), native dtype

    # Squeeze: avg + max pool over the spatial (lane) axis. Sum accumulates in
    # f32 without materializing a full f32 copy of the block; max runs on the
    # native dtype (no padding, so no mask needed).
    x_avg = jnp.sum(x, axis=-1, dtype=jnp.float32) * inv_hw   # (tb, C)
    x_max = jnp.max(x, axis=-1).astype(jnp.float32)           # (tb, C)
    x_se = x_avg + x_max                                      # SENet_v2: sum of pools

    # Excitation MLP, lane-dense: (tb,C)@(C,c_mid) -> ReLU -> (tb,c_mid)@(c_mid,C) -> sigmoid
    h = jnp.dot(x_se, w1t_ref[...], preferred_element_type=jnp.float32) + b1_ref[...]
    h = jnp.maximum(h, 0.0)
    s = jnp.dot(h, w2t_ref[...], preferred_element_type=jnp.float32) + b2_ref[...]
    s = jax.nn.sigmoid(s)                                     # (tb, C) f32

    # Channel-wise rescale directly from the native-dtype block (no f32 round
    # trip of the whole tile; gate is cast down to the I/O dtype).
    o_ref[...] = (x * s.astype(x.dtype)[:, :, None]).astype(o_ref.dtype)


# ----------------------------------------------------------------------------
# Fallback path (huge C*HW): pool+gate kernel with HW tiled as a reduction
# axis, then a separate streaming rescale kernel.
# ----------------------------------------------------------------------------
def _pool_gate_kernel(x_ref, w1t_ref, b1_ref, w2t_ref, b2_ref, s_ref,
                      sum_acc, max_acc, *, hw_true, t_hw):
    h_idx = pl.program_id(1)
    n_hw = pl.num_programs(1)

    @pl.when(h_idx == 0)
    def _():
        sum_acc[...] = jnp.zeros_like(sum_acc)
        max_acc[...] = jnp.full_like(max_acc, -jnp.inf)

    x = x_ref[...]                                            # (1, C, t_hw)
    # Mask only the ragged tail lanes of the final HW tile (tiny (1,1,t_hw) mask).
    valid = hw_true - h_idx * t_hw
    lane = jax.lax.broadcasted_iota(jnp.int32, (1, 1, t_hw), 2)
    mask = lane < valid
    xs = jnp.where(mask, x, jnp.zeros_like(x))
    xm = jnp.where(mask, x.astype(jnp.float32), -jnp.inf)

    sum_acc[...] += jnp.sum(xs, axis=-1, dtype=jnp.float32)   # (1, C)
    max_acc[...] = jnp.maximum(max_acc[...], jnp.max(xm, axis=-1))

    @pl.when(h_idx == n_hw - 1)
    def _():
        x_se = sum_acc[...] * (1.0 / hw_true) + max_acc[...]  # (1, C)
        h = jnp.dot(x_se, w1t_ref[...], preferred_element_type=jnp.float32) + b1_ref[...]
        h = jnp.maximum(h, 0.0)
        s = jnp.dot(h, w2t_ref[...], preferred_element_type=jnp.float32) + b2_ref[...]
        s = jax.nn.sigmoid(s)                                 # (1, C)
        s_ref[...] = s[:, None, :].astype(s_ref.dtype)        # (1, 1, C)


def _rescale_kernel(x_ref, s_ref, o_ref):
    s = s_ref[...].reshape(1, -1)                             # (1, C) f32
    o_ref[...] = (x_ref[...] * s.astype(x_ref.dtype)[:, :, None]).astype(o_ref.dtype)


# ----------------------------------------------------------------------------
# Host-side helpers.
# ----------------------------------------------------------------------------
def _vmem_capacity_bytes():
    """Per-core VMEM capacity; conservative 64 MiB (v7x) if the query fails."""
    try:
        info = pltpu.get_tpu_info()
        for name in ("vmem_capacity_bytes", "vmem_bytes", "vmem_size_bytes"):
            v = getattr(info, name, None)
            if v:
                return int(v)
    except Exception:
        pass
    return 64 << 20


def _choose_batch_tile(B, per_batch_bytes, per_block_cap):
    divisors = [d for d in range(1, B + 1) if B % d == 0]
    fitting = [d for d in divisors if d * per_batch_bytes <= per_block_cap] or [1]
    # Prefer >= 8 grid steps (>= 4 per v7x TensorCore) with the largest block
    # that still allows it; otherwise keep >= 2 steps; otherwise largest block.
    for d in reversed(fitting):
        if B // d >= 8:
            return d
    for d in reversed(fitting):
        if B // d >= 2:
            return d
    return fitting[-1]


def _senet_v2_large(x_flat, w1t, b1_row, w2t, b2_row, *, per_block_cap, max_limit,
                    weight_bytes):
    """Fallback for shapes where one (C, HW) block exceeds the per-block budget."""
    B, C, HW = x_flat.shape
    c_mid = w1t.shape[1]
    io_dtype = x_flat.dtype
    itemsize = jnp.dtype(io_dtype).itemsize

    max_lanes = max(128, per_block_cap // max(1, C * itemsize))
    if max_lanes >= HW:
        t_hw = HW
    else:
        t_hw = max(128, (max_lanes // 128) * 128)
    n_hw = pl.cdiv(HW, t_hw)
    blk_bytes = C * t_hw * itemsize

    pool_limit = int(min(max(2 * blk_bytes + 2 * weight_bytes + (4 << 20), 16 << 20),
                         max_limit))
    resc_limit = int(min(max(4 * blk_bytes + (4 << 20), 16 << 20), max_limit))

    pool_kernel = functools.partial(_pool_gate_kernel, hw_true=HW, t_hw=t_hw)
    s = pl.pallas_call(
        pool_kernel,
        out_shape=jax.ShapeDtypeStruct((B, 1, C), jnp.float32),
        grid_spec=pltpu.PrefetchScalarGridSpec(
            num_scalar_prefetch=0,
            grid=(B, n_hw),
            in_specs=[
                pl.BlockSpec((1, C, t_hw), lambda b, h: (b, 0, h)),
                pl.BlockSpec((C, c_mid), lambda b, h: (0, 0)),
                pl.BlockSpec((1, c_mid), lambda b, h: (0, 0)),
                pl.BlockSpec((c_mid, C), lambda b, h: (0, 0)),
                pl.BlockSpec((1, C), lambda b, h: (0, 0)),
            ],
            out_specs=pl.BlockSpec((1, 1, C), lambda b, h: (b, 0, 0)),
            scratch_shapes=[pltpu.VMEM((1, C), jnp.float32),
                            pltpu.VMEM((1, C), jnp.float32)],
        ),
        compiler_params=pltpu.CompilerParams(
            dimension_semantics=("parallel", "arbitrary"),
            vmem_limit_bytes=pool_limit,
        ),
    )(x_flat, w1t, b1_row, w2t, b2_row)

    out_flat = pl.pallas_call(
        _rescale_kernel,
        out_shape=jax.ShapeDtypeStruct((B, C, HW), io_dtype),
        grid_spec=pltpu.PrefetchScalarGridSpec(
            num_scalar_prefetch=0,
            grid=(B, n_hw),
            in_specs=[
                pl.BlockSpec((1, C, t_hw), lambda b, h: (b, 0, h)),
                pl.BlockSpec((1, 1, C), lambda b, h: (b, 0, 0)),
            ],
            out_specs=pl.BlockSpec((1, C, t_hw), lambda b, h: (b, 0, h)),
        ),
        compiler_params=pltpu.CompilerParams(
            dimension_semantics=("parallel", "parallel"),
            vmem_limit_bytes=resc_limit,
        ),
    )(x_flat, s)
    return out_flat


# ----------------------------------------------------------------------------
# Public wrapper.
# ----------------------------------------------------------------------------
def senet_v2(x, w1, b1, w2, b2):
    """x: (B, C, H, W); w1/w2 follow the PyTorch Linear layout (out, in)."""
    B, C, H, W = x.shape
    HW = H * W
    c_mid = w1.shape[0]
    io_dtype = x.dtype
    itemsize = jnp.dtype(io_dtype).itemsize

    # Collapse the spatial axes (free, contiguous reshape) — no pad, no slice.
    x_flat = x.reshape(B, C, HW)

    # Lane-dense parameter layout: transposed weights, row-vector biases.
    w1t = w1.T                         # (C, c_mid)
    w2t = w2.T                         # (c_mid, C)
    b1_row = b1.reshape(1, c_mid)
    b2_row = b2.reshape(1, C)
    weight_bytes = sum(int(a.size) * jnp.dtype(a.dtype).itemsize
                       for a in (w1t, b1_row, w2t, b2_row))

    # Budget derived from the actual chip: 64 MiB VMEM on v7x, 128 MiB v5e/v6e.
    vmem_cap = _vmem_capacity_bytes()
    max_limit = int(max(min(vmem_cap - (8 << 20), 100 << 20), 16 << 20))
    per_block_cap = max((max_limit - 2 * weight_bytes - (4 << 20)) // 4, 1 << 20)

    per_batch_bytes = C * HW * itemsize
    if per_batch_bytes > per_block_cap:
        # Single-batch block cannot be double-buffered: use the HW-tiled path.
        out_flat = _senet_v2_large(x_flat, w1t, b1_row, w2t, b2_row,
                                   per_block_cap=per_block_cap,
                                   max_limit=max_limit,
                                   weight_bytes=weight_bytes)
        return out_flat.reshape(B, C, H, W)

    tb = _choose_batch_tile(B, per_batch_bytes, per_block_cap)
    grid = (B // tb,)
    block_bytes = tb * per_batch_bytes
    vmem_limit = int(min(max(4 * block_bytes + 2 * weight_bytes + (4 << 20), 16 << 20),
                         max_limit))

    cost = pl.CostEstimate(
        flops=int(3 * B * C * HW + 4 * B * C * c_mid),
        transcendentals=int(B * C),
        bytes_accessed=int(2 * B * C * HW * itemsize + weight_bytes),
    )

    kernel = functools.partial(_senet_v2_kernel, inv_hw=1.0 / HW)
    # TODO(synk): constant-index weight inputs could be single-buffered via
    # pipeline_mode=pl.Buffered(1); left at the default for compatibility
    # (weights are tiny relative to the data blocks).
    out_flat = pl.pallas_call(
        kernel,
        out_shape=jax.ShapeDtypeStruct((B, C, HW), io_dtype),
        grid_spec=pltpu.PrefetchScalarGridSpec(
            num_scalar_prefetch=0,
            grid=grid,
            in_specs=[
                pl.BlockSpec((tb, C, HW), lambda b: (b, 0, 0)),
                pl.BlockSpec((C, c_mid), lambda b: (0, 0)),
                pl.BlockSpec((1, c_mid), lambda b: (0, 0)),
                pl.BlockSpec((c_mid, C), lambda b: (0, 0)),
                pl.BlockSpec((1, C), lambda b: (0, 0)),
            ],
            out_specs=pl.BlockSpec((tb, C, HW), lambda b: (b, 0, 0)),
        ),
        compiler_params=pltpu.CompilerParams(
            dimension_semantics=("parallel",),
            vmem_limit_bytes=vmem_limit,
        ),
        cost_estimate=cost,
    )(x_flat, w1t, b1_row, w2t, b2_row)

    return out_flat.reshape(B, C, H, W)


def _reference(x, w1, b1, w2, b2):
    # Pure-JAX reference matching the PyTorch SENet_v2 forward pass.
    x_avg = jnp.mean(x, axis=(2, 3))          # (B, C)
    x_max = jnp.max(x, axis=(2, 3))           # (B, C)
    x_se = x_avg + x_max
    h = jnp.maximum(x_se @ w1.T + b1, 0.0)
    s = jax.nn.sigmoid(h @ w2.T + b2)
    return x * s[:, :, None, None]


if __name__ == "__main__":
    key = jax.random.PRNGKey(0)
    B, C, H, W = 2, 4, 16, 16
    r = 2
    c_mid = C // r

    k_x, k_w1, k_b1, k_w2, k_b2 = jax.random.split(key, 5)
    x = jax.random.normal(k_x, (B, C, H, W), dtype=jnp.float32)
    # Deterministic synthetic params (PyTorch Linear weight shape: (out, in)).
    w1 = jax.random.normal(k_w1, (c_mid, C), dtype=jnp.float32) * 0.1
    b1 = jax.random.normal(k_b1, (c_mid,), dtype=jnp.float32) * 0.1
    w2 = jax.random.normal(k_w2, (C, c_mid), dtype=jnp.float32) * 0.1
    b2 = jax.random.normal(k_b2, (C,), dtype=jnp.float32) * 0.1

    out = senet_v2(x, w1, b1, w2, b2)
    out = jax.block_until_ready(out)

    ref = _reference(x, w1, b1, w2, b2)
    assert out.shape == (B, C, H, W)
    assert jnp.allclose(out, ref, atol=1e-5, rtol=1e-5)

    print("KERNEL_OK")
</pallas_src>

<mosaic_0001>
module attributes {stable_mosaic.version = 11 : i64} {
  func.func @_senet_v2_kernel(%arg0: i32, %arg1: memref<1x4x256xf32, #tpu.memory_space<vmem>>, %arg2: memref<4x2xf32, #tpu.memory_space<vmem>>, %arg3: memref<1x2xf32, #tpu.memory_space<vmem>>, %arg4: memref<2x4xf32, #tpu.memory_space<vmem>>, %arg5: memref<1x4xf32, #tpu.memory_space<vmem>>, %arg6: memref<1x4x256xf32, #tpu.memory_space<vmem>>) attributes {dimension_semantics = [#tpu.dimension_semantics<parallel>], iteration_bounds = array<i64: 2>, scalar_prefetch = 0 : i64, scratch_operands = 0 : i64, tpu.core_type = #tpu.core_type<tc>, window_params = [{transform_indices = @transform_0, window_bounds = array<i64: 1, 4, 256>}, {pipeline_mode = #tpu.pipeline_mode<synchronous>, transform_indices = @transform_1, window_bounds = array<i64: 4, 2>}, {pipeline_mode = #tpu.pipeline_mode<synchronous>, transform_indices = @transform_2, window_bounds = array<i64: 1, 2>}, {pipeline_mode = #tpu.pipeline_mode<synchronous>, transform_indices = @transform_3, window_bounds = array<i64: 2, 4>}, {pipeline_mode = #tpu.pipeline_mode<synchronous>, transform_indices = @transform_4, window_bounds = array<i64: 1, 4>}, {transform_indices = @transform_5, window_bounds = array<i64: 1, 4, 256>}]} {
    %c0 = arith.constant 0 : index
    %c0_0 = arith.constant 0 : index
    %c0_1 = arith.constant 0 : index
    %0 = vector.load %arg1[%c0, %c0_0, %c0_1] : memref<1x4x256xf32, #tpu.memory_space<vmem>>, vector<1x4x256xf32>
    %cst = arith.constant dense<0.000000e+00> : vector<1x4xf32>
    %1 = vector.multi_reduction <add>, %0, %cst [2] : vector<1x4x256xf32> to vector<1x4xf32>
    %cst_2 = arith.constant 3.906250e-03 : f32
    %2 = vector.broadcast %cst_2 : f32 to vector<1x4xf32>
    %3 = arith.mulf %1, %2 : vector<1x4xf32>
    %cst_3 = arith.constant dense<0xFF800000> : vector<1x4xf32>
    %4 = vector.multi_reduction <maximumf>, %0, %cst_3 [2] : vector<1x4x256xf32> to vector<1x4xf32>
    %5 = arith.addf %3, %4 : vector<1x4xf32>
    %c0_4 = arith.constant 0 : index
    %c0_5 = arith.constant 0 : index
    %6 = vector.load %arg2[%c0_4, %c0_5] : memref<4x2xf32, #tpu.memory_space<vmem>>, vector<4x2xf32>
    %cst_6 = arith.constant dense<0.000000e+00> : vector<1x2xf32>
    %7 = tpu.matmul %5, %6, %cst_6 {dimension_numbers = #tpu.dot_dimension_numbers<[1], [0], [0], [1], [0, 0, 1, 1], [], []>} : vector<1x4xf32>, vector<4x2xf32>, vector<1x2xf32> -> vector<1x2xf32>
    %c0_7 = arith.constant 0 : index
    %c0_8 = arith.constant 0 : index
    %8 = vector.load %arg3[%c0_7, %c0_8] : memref<1x2xf32, #tpu.memory_space<vmem>>, vector<1x2xf32>
    %9 = arith.addf %7, %8 : vector<1x2xf32>
    %cst_9 = arith.constant 0.000000e+00 : f32
    %10 = vector.broadcast %cst_9 : f32 to vector<1x2xf32>
    %11 = arith.maximumf %9, %10 : vector<1x2xf32>
    %c0_10 = arith.constant 0 : index
    %c0_11 = arith.constant 0 : index
    %12 = vector.load %arg4[%c0_10, %c0_11] : memref<2x4xf32, #tpu.memory_space<vmem>>, vector<2x4xf32>
    %cst_12 = arith.constant dense<0.000000e+00> : vector<1x4xf32>
    %13 = tpu.matmul %11, %12, %cst_12 {dimension_numbers = #tpu.dot_dimension_numbers<[1], [0], [0], [1], [0, 0, 1, 1], [], []>} : vector<1x2xf32>, vector<2x4xf32>, vector<1x4xf32> -> vector<1x4xf32>
    %c0_13 = arith.constant 0 : index
    %c0_14 = arith.constant 0 : index
    %14 = vector.load %arg5[%c0_13, %c0_14] : memref<1x4xf32, #tpu.memory_space<vmem>>, vector<1x4xf32>
    %15 = arith.addf %13, %14 : vector<1x4xf32>
    %16 = arith.negf %15 : vector<1x4xf32>
    %17 = math.exp %16 : vector<1x4xf32>
    %cst_15 = arith.constant 1.000000e+00 : f32
    %18 = vector.broadcast %cst_15 : f32 to vector<1x4xf32>
    %19 = arith.addf %18, %17 : vector<1x4xf32>
    %20 = arith.divf %18, %19 : vector<1x4xf32>
    %21 = vector.shape_cast %20 : vector<1x4xf32> to vector<1x4x1xf32>
    %22 = vector.broadcast %21 : vector<1x4x1xf32> to vector<1x4x256xf32>
    %23 = arith.mulf %0, %22 : vector<1x4x256xf32>
    %c0_16 = arith.constant 0 : index
    %c0_17 = arith.constant 0 : index
    %c0_18 = arith.constant 0 : index
    %24 = vector.load %arg6[%c0_16, %c0_17, %c0_18] : memref<1x4x256xf32, #tpu.memory_space<vmem>>, vector<1x4x256xf32>
    tpu.vector_store %arg6[%c0_16, %c0_17, %c0_18], %23 {strides = array<i32>} : memref<1x4x256xf32, #tpu.memory_space<vmem>>, vector<1x4x256xf32>,
    return
  }
  func.func @transform_0(%arg0: i32) -> (i32, i32, i32) {
    %c0_i32 = arith.constant 0 : i32
    %c0_i32_0 = arith.constant 0 : i32
    %c0_i32_1 = arith.constant 0 : i32
    return %arg0, %c0_i32, %c0_i32_0 : i32, i32, i32
  }
  func.func @transform_1(%arg0: i32) -> (i32, i32) {
    %c0_i32 = arith.constant 0 : i32
    %c0_i32_0 = arith.constant 0 : i32
    %c0_i32_1 = arith.constant 0 : i32
    return %c0_i32, %c0_i32_0 : i32, i32
  }
  func.func @transform_2(%arg0: i32) -> (i32, i32) {
    %c0_i32 = arith.constant 0 : i32
    %c0_i32_0 = arith.constant 0 : i32
    %c0_i32_1 = arith.constant 0 : i32
    return %c0_i32, %c0_i32_0 : i32, i32
  }
  func.func @transform_3(%arg0: i32) -> (i32, i32) {
    %c0_i32 = arith.constant 0 : i32
    %c0_i32_0 = arith.constant 0 : i32
    %c0_i32_1 = arith.constant 0 : i32
    return %c0_i32, %c0_i32_0 : i32, i32
  }
  func.func @transform_4(%arg0: i32) -> (i32, i32) {
    %c0_i32 = arith.constant 0 : i32
    %c0_i32_0 = arith.constant 0 : i32
    %c0_i32_1 = arith.constant 0 : i32
    return %c0_i32, %c0_i32_0 : i32, i32
  }
  func.func @transform_5(%arg0: i32) -> (i32, i32, i32) {
    %c0_i32 = arith.constant 0 : i32
    %c0_i32_0 = arith.constant 0 : i32
    %c0_i32_1 = arith.constant 0 : i32
    return %arg0, %c0_i32, %c0_i32_0 : i32, i32, i32
  }
}

</mosaic_0001>

<llo_original>
// kernel: tpu_custom_call.1
$region0: #{tpu_custom_call.1}
  #allocation0 [shape = 'u32[]', space=smem, size = 0x4, offset = 0x4, fixed_abs, tag = 'smem constant byte address 0x4 - core index']
  #allocation1 [shape = 'u32[72,128]{1,0:T(1,128)}', space=vmem, size = 0x9000, scoped, tag = 'internal scratch']
  %s0 = inlined_call_operand.hbm [shape: f32[2,4,256], index: 0, kind: input, shape index: {}]
  %s1 = inlined_call_operand.vmem [shape: f32[4,2], index: 1, kind: input, shape index: {}]
  %s2 = inlined_call_operand.vmem [shape: f32[1,2], index: 2, kind: input, shape index: {}]
  %s3 = inlined_call_operand.vmem [shape: f32[2,4], index: 3, kind: input, shape index: {}]
  %s4 = inlined_call_operand.vmem [shape: f32[1,4], index: 4, kind: input, shape index: {}]
  %s5 = inlined_call_operand.hbm [shape: f32[2,4,256], index: 5, kind: output, shape index: {}]
  %s6 = sld [smem:[#allocation0]]
  $region57: #{tpu_custom_call.1} parent=0
    _
  %s8 = ssub.s32 1, %s6
  %s9 = scalar_select 0, %s8, %s6
  $region1: #{tpu_custom_call.1} parent=0
    #allocation2 [shape = 'u8[8192]{0}', space=vmem, size = 0x2000, scoped, tag = 'input window, operand 0']
    #allocation3 [shape = 's32[2]{0}', space=sflag, size = 0x8, scoped, tag = 'scoped memory for tpu_custom_call.1']
    #allocation4 [shape = 's32[2]{0}', space=sflag, size = 0x8, scoped, tag = 'scoped memory for tpu_custom_call.1']
    #allocation5 [shape = 'u8[8192]{0}', space=vmem, size = 0x2000, scoped, tag = 'output window, operand 0']
    %10 = vsyncpa [#allocation3], 0
    %s11 = scalar_lea.sflag [#allocation3], 1
    %12 = vsyncpa %s11, 0
    %13 = vsyncpa [#allocation4], 0
    %s14 = scalar_lea.sflag [#allocation4], 1
    %15 = vsyncpa %s14, 0
    loop: start=0, step=1, limit=4
    $region2: #{tpu_custom_call.1} parent=1 // loop_pre_header
      _
    $region3: #{tpu_custom_call.1} parent=1 // loop_header
      %s17 = sphi 0, %s21
      %p18 = scmp.ge.s32.totalorder %s17, 4
      %s27 = sphi 0, %s29
      %s30 = sphi 0, %s27
      %s31 = sphi 0, %s30
      %s47 = sphi 0, %s31
      %s51 = sphi 0, %s51
      %s53 = sphi 0, %s51
      %s54 = sphi 0, %s53
      %s68 = sphi 0, %s54
      %s72 = sphi 0, %s72
      %s74 = sphi 0, %s72
      %s75 = sphi 0, %s74
      %s89 = sphi 0, %s75
      %s93 = sphi 0, %s93
      %s95 = sphi 0, %s93
      %s96 = sphi 0, %s95
      %s110 = sphi 0, %s96
      %s114 = sphi 0, %s114
      %s116 = sphi 0, %s114
      %s117 = sphi 0, %s116
      %s131 = sphi 0, %s117
      %s137 = sphi 0, %s139
      %s140 = sphi 0, %s137
      %s141 = sphi 0, %s140
      %s157 = sphi 0, %s141
    $region4: #{tpu_custom_call.1} parent=1 // loop_header_branch
      %20 = sbr.rel (%p18) target = $region8
    $region5: #{tpu_custom_call.1} parent=1 // loop_body
      %s22 = ssub.s32 %s17, 1
      %s23 = ssub.s32 %s17, 2
      %s24 = sadd.s32 %s17, 1
      %s25 = ssub.s32 %s17, %s24
      %p26 = scmp.eq.s32.totalorder %s25, 0
      %s28 = sadd.s32 %s27, 1
      %s29 = scalar_select %p26, %s27, %s28
      %p32 = pneg %p26
      %p33 = scmp.eq.s32.totalorder %s17, 1
      %p34 = por %p32, %p33
      %p35 = scmp.ne.s32.totalorder %s27, %s30
      %p36 = scmp.eq.s32.totalorder %s17, 0
      %p37 = por %p35, %p36
      %p38 = scmp.ne.s32.totalorder %s27, %s30
      %p39 = scmp.eq.s32.totalorder %s22, 1
      %p40 = por %p38, %p39
      %p41 = scmp.ne.s32.totalorder %s30, %s31
      %p42 = scmp.eq.s32.totalorder %s22, 0
      %p43 = por %p41, %p42
      %p44 = scmp.ne.s32.totalorder %s30, %s31
      %p45 = scmp.eq.s32.totalorder %s23, 1
      %p46 = por %p44, %p45
      %p48 = scmp.ne.s32.totalorder %s31, %s47
      %p49 = scmp.eq.s32.totalorder %s23, 0
      %p50 = por %p48, %p49
      %s52 = sadd.s32 %s51, 1
      %p55 = scmp.eq.s32.totalorder %s17, 1
      %p56 = scmp.ne.s32.totalorder %s51, %s53
      %p57 = scmp.eq.s32.totalorder %s17, 0
      %p58 = por %p56, %p57
      %p59 = scmp.ne.s32.totalorder %s51, %s53
      %p60 = scmp.eq.s32.totalorder %s22, 1
      %p61 = por %p59, %p60
      %p62 = scmp.ne.s32.totalorder %s53, %s54
      %p63 = scmp.eq.s32.totalorder %s22, 0
      %p64 = por %p62, %p63
      %p65 = scmp.ne.s32.totalorder %s53, %s54
      %p66 = scmp.eq.s32.totalorder %s23, 1
      %p67 = por %p65, %p66
      %p69 = scmp.ne.s32.totalorder %s54, %s68
      %p70 = scmp.eq.s32.totalorder %s23, 0
      %p71 = por %p69, %p70
      %s73 = sadd.s32 %s72, 1
      %p76 = scmp.eq.s32.totalorder %s17, 1
      %p77 = scmp.ne.s32.totalorder %s72, %s74
      %p78 = scmp.eq.s32.totalorder %s17, 0
      %p79 = por %p77, %p78
      %p80 = scmp.ne.s32.totalorder %s72, %s74
      %p81 = scmp.eq.s32.totalorder %s22, 1
      %p82 = por %p80, %p81
      %p83 = scmp.ne.s32.totalorder %s74, %s75
      %p84 = scmp.eq.s32.totalorder %s22, 0
      %p85 = por %p83, %p84
      %p86 = scmp.ne.s32.totalorder %s74, %s75
      %p87 = scmp.eq.s32.totalorder %s23, 1
      %p88 = por %p86, %p87
      %p90 = scmp.ne.s32.totalorder %s75, %s89
      %p91 = scmp.eq.s32.totalorder %s23, 0
      %p92 = por %p90, %p91
      %s94 = sadd.s32 %s93, 1
      %p97 = scmp.eq.s32.totalorder %s17, 1
      %p98 = scmp.ne.s32.totalorder %s93, %s95
      %p99 = scmp.eq.s32.totalorder %s17, 0
      %p100 = por %p98, %p99
      %p101 = scmp.ne.s32.totalorder %s93, %s95
      %p102 = scmp.eq.s32.totalorder %s22, 1
      %p103 = por %p101, %p102
      %p104 = scmp.ne.s32.totalorder %s95, %s96
      %p105 = scmp.eq.s32.totalorder %s22, 0
      %p106 = por %p104, %p105
      %p107 = scmp.ne.s32.totalorder %s95, %s96
      %p108 = scmp.eq.s32.totalorder %s23, 1
      %p109 = por %p107, %p108
      %p111 = scmp.ne.s32.totalorder %s96, %s110
      %p112 = scmp.eq.s32.totalorder %s23, 0
      %p113 = por %p111, %p112
      %s115 = sadd.s32 %s114, 1
      %p118 = scmp.eq.s32.totalorder %s17, 1
      %p119 = scmp.ne.s32.totalorder %s114, %s116
      %p120 = scmp.eq.s32.totalorder %s17, 0
      %p121 = por %p119, %p120
      %p122 = scmp.ne.s32.totalorder %s114, %s116
      %p123 = scmp.eq.s32.totalorder %s22, 1
      %p124 = por %p122, %p123
      %p125 = scmp.ne.s32.totalorder %s116, %s117
      %p126 = scmp.eq.s32.totalorder %s22, 0
      %p127 = por %p125, %p126
      %p128 = scmp.ne.s32.totalorder %s116, %s117
      %p129 = scmp.eq.s32.totalorder %s23, 1
      %p130 = por %p128, %p129
      %p132 = scmp.ne.s32.totalorder %s117, %s131
      %p133 = scmp.eq.s32.totalorder %s23, 0
      %p134 = por %p132, %p133
      %s135 = ssub.s32 %s17, %s24
      %p136 = scmp.eq.s32.totalorder %s135, 0
      %s138 = sadd.s32 %s137, 1
      %s139 = scalar_select %p136, %s137, %s138
      %p142 = pneg %p136
      %p143 = scmp.eq.s32.totalorder %s17, 1
      %p144 = por %p142, %p143
      %p145 = scmp.ne.s32.totalorder %s137, %s140
      %p146 = scmp.eq.s32.totalorder %s17, 0
      %p147 = por %p145, %p146
      %p148 = scmp.ne.s32.totalorder %s137, %s140
      %p149 = scmp.eq.s32.totalorder %s22, 1
      %p150 = por %p148, %p149
      %p151 = scmp.ne.s32.totalorder %s140, %s141
      %p152 = scmp.eq.s32.totalorder %s22, 0
      %p153 = por %p151, %p152
      %p154 = scmp.ne.s32.totalorder %s140, %s141
      %p155 = scmp.eq.s32.totalorder %s23, 1
      %p156 = por %p154, %p155
      %p158 = scmp.ne.s32.totalorder %s141, %s157
      %p159 = scmp.eq.s32.totalorder %s23, 0
      %p160 = por %p158, %p159
      %p161 = scmp.le.s32.totalorder 1, %s17
      %p162 = scmp.lt.s32.totalorder %s17, 3
      %p163 = pnand %p161, %p162
      %p164 = pneg %p163
      // Predicated region
      $region9: #{tpu_custom_call.1} parent=5 // pred_check
        _
      $region10: #{tpu_custom_call.1} parent=5 // pred_check_branch
        %166 = sbr.rel (%p163) target = $region12
      $region11: #{tpu_custom_call.1} parent=5 // pred_region
        %s167 = ssub.s32 %s17, 1
        // Predicated region
        $region13: #{tpu_custom_call.1} parent=11 // pred_check
          %p168 = pneg %p64
        $region14: #{tpu_custom_call.1} parent=11 // pred_check_branch
          %170 = sbr.rel (%p168) target = $region16
        $region15: #{tpu_custom_call.1} parent=11 // pred_region
          _
        $region16: #{tpu_custom_call.1} parent=11 // pred_fallthru
          _
        // Predicated region
        $region17: #{tpu_custom_call.1} parent=11 // pred_check
          %p171 = pneg %p85
        $region18: #{tpu_custom_call.1} parent=11 // pred_check_branch
          %173 = sbr.rel (%p171) target = $region20
        $region19: #{tpu_custom_call.1} parent=11 // pred_region
          _
        $region20: #{tpu_custom_call.1} parent=11 // pred_fallthru
          _
        // Predicated region
        $region21: #{tpu_custom_call.1} parent=11 // pred_check
          %p174 = pneg %p106
        $region22: #{tpu_custom_call.1} parent=11 // pred_check_branch
          %176 = sbr.rel (%p174) target = $region24
        $region23: #{tpu_custom_call.1} parent=11 // pred_region
          _
        $region24: #{tpu_custom_call.1} parent=11 // pred_fallthru
          _
        // Predicated region
        $region25: #{tpu_custom_call.1} parent=11 // pred_check
          %p177 = pneg %p127
        $region26: #{tpu_custom_call.1} parent=11 // pred_check_branch
          %179 = sbr.rel (%p177) target = $region28
        $region27: #{tpu_custom_call.1} parent=11 // pred_region
          _
        $region28: #{tpu_custom_call.1} parent=11 // pred_fallthru
          _
      $region12: #{tpu_custom_call.1} parent=5 // pred_fallthru
        _
      %p180 = scmp.lt.s32.totalorder %s17, 2
      // Predicated region
      $region29: #{tpu_custom_call.1} parent=5 // pred_check
        %p181 = pneg %p180
      $region30: #{tpu_custom_call.1} parent=5 // pred_check_branch
        %183 = sbr.rel (%p181) target = $region32
      $region31: #{tpu_custom_call.1} parent=5 // pred_region
        // Predicated region
        $region33: #{tpu_custom_call.1} parent=31 // pred_check
          %p184 = pneg %p37
        $region34: #{tpu_custom_call.1} parent=31 // pred_check_branch
          %186 = sbr.rel (%p184) target = $region36
        $region35: #{tpu_custom_call.1} parent=31 // pred_region
          %s187 = sand.u32 %s27, 1
          %s188 = scalar_lea.sflag [#allocation3], %s187
          %s189 = sand.u32 %s27, 1
          %s190 = smul.addr %s189, 8
          %s191 = scalar_lea.vmem [#allocation2], %s190
          %193 = vsyncadd %s188, 0
          %s194 = smul.addr %s17, 2
          %s195 = smul.addr %s194, 4
          %s196 = scalar_lea.hbm %s0, %s195
          %s198 = sshll.u32 %s196, 4
          %s199 = int_to_ptr.hbm [resolvable:$true] %s198
          %s200 = sshll.u32 %s191, 4
          %s201 = int_to_ptr.vmem [resolvable:$true] %s200
          %203 = dma.hbm_to_vmem [thread:$0]  %s199, 128, %s201, %s188
        $region36: #{tpu_custom_call.1} parent=31 // pred_fallthru
          _
      $region32: #{tpu_custom_call.1} parent=5 // pred_fallthru
        _
      %p204 = scmp.le.s32.totalorder 1, %s17
      %p205 = scmp.lt.s32.totalorder %s17, 3
      %p206 = pnand %p204, %p205
      %p207 = pneg %p206
      // Predicated region
      $region37: #{tpu_custom_call.1} parent=5 // pred_check
        _
      $region38: #{tpu_custom_call.1} parent=5 // pred_check_branch
        %209 = sbr.rel (%p206) target = $region40
      $region39: #{tpu_custom_call.1} parent=5 // pred_region
        %s210 = ssub.s32 %s17, 1
        %s211 = sand.u32 %s30, 1
        %s212 = scalar_lea.sflag [#allocation3], %s211
        %s213 = sand.u32 %s30, 1
        %s214 = smul.addr %s213, 8
        %s215 = scalar_lea.vmem [#allocation2], %s214
        // Predicated region
        $region41: #{tpu_custom_call.1} parent=39 // pred_check
          %p216 = pneg %p43
        $region42: #{tpu_custom_call.1} parent=39 // pred_check_branch
          %218 = sbr.rel (%p216) target = $region44
        $region43: #{tpu_custom_call.1} parent=39 // pred_region
          %220 = dma.done %s212, 128
        $region44: #{tpu_custom_call.1} parent=39 // pred_fallthru
          _
        %s221 = sand.u32 %s30, 1
        %s222 = scalar_lea.sflag [#allocation3], %s221
        %s223 = sand.u32 %s30, 1
        %s224 = smul.addr %s223, 8
        %s225 = scalar_lea.vmem [#allocation2], %s224
        %p226 = pneg %p43
        %p227 = pneg %p40
        %p228 = pneg %p64
        %p229 = pneg %p61
        %p230 = pneg %p85
        %p231 = pneg %p82
        %p232 = pneg %p106
        %p233 = pneg %p103
        %p234 = pneg %p127
        %p235 = pneg %p124
        %p236 = pneg %p153
        %p237 = pneg %p150
        %s238 = sand.u32 %s140, 1
        %s239 = scalar_lea.sflag [#allocation4], %s238
        %s240 = sand.u32 %s140, 1
        %s241 = smul.addr %s240, 8
        %s242 = scalar_lea.vmem [#allocation5], %s241
        %v243 = vld [vmem:[%s215] sm:$0xff]
        %245 = vst [vmem:[#allocation1] ss:$2 sm:$0xff] %v243
        %v246 = vld.sshfl [vmem:[#allocation1] sm:$0xff pattern:$0x75316420]
        %v247 = vld.sshfl [vmem:[#allocation1 + $0x8] sm:$0xff pattern:$0x75316420]
        %vm250 = vcmask 1043456
        %v251 = vsel %vm250, %v246, 0.0
        %v252 = vsel %vm250, %v247, 0.0
        %v253 = vadd.f32 %v251, %v252
        %254 = vadd.xlane.f32.xlu0 %v253
        %v255 = vpop.xlane.xlu0 %254
        %v256 = vmul.f32 %v255, 0.00390625
        %257 = vst [vmem:[#allocation1] ss:$2 sm:$0xff] %v243
        %v258 = vld.sshfl [vmem:[#allocation1] sm:$0xff pattern:$0x75316420]
        %v259 = vld.sshfl [vmem:[#allocation1 + $0x8] sm:$0xff pattern:$0x75316420]
        %v262 = vsel %vm250, %v258, -inf
        %v263 = vsel %vm250, %v259, -inf
        %v264 = vmax.f32 %v262, %v263
        %265 = vmax.xlane.f32.xlu0 %v264
        %v266 = vpop.xlane.xlu0 %265
        %v267 = vadd.f32 %v256, %v266
        %v268 = vld [vmem:[%s1] sm:$0xf]
        %v269 = vld [vmem:[%s2] sm:$0x1]
        %v271 = vlaneseq
        %v272 = vand.u32 %v271, 127
        %v273 = vperm.slane %v267, %v272
        %vm274 = vcmask 31744
        %v275 = vsel %vm274, %v273, 0
        %v278 = vsel %vm250, %v268, 0
        %280 = vmatpush.msra.mxu0 0.0
        %281 = vmatpush.msra.mxu0 0.0
        %282 = vmatpush.msra.mxu0 0.0
        %283 = vmatpush.msra.mxu0 0.0
        %284 = vmatpush.msra.mxu0 0.0
        %285 = vmatpush.msra.mxu0 0.0
        %286 = vmatpush.msra.mxu0 0.0
        %287 = vmatpush.msra.mxu0 0.0
        %288 = vmatpush.msra.mxu0 0.0
        %289 = vmatpush.msra.mxu0 0.0
        %290 = vmatpush.msra.mxu0 0.0
        %291 = vmatpush.msra.mxu0 0.0
        %292 = vmatpush.msra.mxu0 0.0
        %293 = vmatpush.msra.mxu0 0.0
        %294 = vmatpush.msra.mxu0 0.0
        %295 = vmatpush.msra.mxu0 %v278
        %296 = vmatmul.f32.gmra.mxu0 %v275
        %v297 = vpop.f32.mrf.mxu0
        %v298 = vadd.f32 %v269, %v297
        %299 = vdwg.mxu0
        %v300 = vmax.f32 %v298, 0.0
        %v301 = vld [vmem:[%s3] sm:$0x3]
        %v302 = vld [vmem:[%s4] sm:$0x1]
        %vm303 = vcmask 15360
        %v305 = vsel %vm303, %v300, 0
        %vm307 = vcmask 1041408
        %v309 = vsel %vm307, %v301, 0
        %311 = vmatpush.msra.mxu0 0.0
        %312 = vmatpush.msra.mxu0 0.0
        %313 = vmatpush.msra.mxu0 0.0
        %314 = vmatpush.msra.mxu0 0.0
        %315 = vmatpush.msra.mxu0 0.0
        %316 = vmatpush.msra.mxu0 0.0
        %317 = vmatpush.msra.mxu0 0.0
        %318 = vmatpush.msra.mxu0 0.0
        %319 = vmatpush.msra.mxu0 0.0
        %320 = vmatpush.msra.mxu0 0.0
        %321 = vmatpush.msra.mxu0 0.0
        %322 = vmatpush.msra.mxu0 0.0
        %323 = vmatpush.msra.mxu0 0.0
        %324 = vmatpush.msra.mxu0 0.0
        %325 = vmatpush.msra.mxu0 0.0
        %326 = vmatpush.msra.mxu0 %v309
        %327 = vmatmul.f32.gmra.mxu0 %v305
        %v328 = vpop.f32.mrf.mxu0
        %v329 = vadd.f32 %v302, %v328
        %330 = vdwg.mxu0
        %v331 = vxor.u32 %v329, 2147483648
        %v332 = vmul.f32 %v331, 1.442695
        %v333 = vpow.pop %v332
        %v334 = vadd.f32 %v333, 1.0
        %v335 = vrcp.pop %v334
        %v336 = vmul.f32 %v334, %v335
        %v337 = vsub.f32 1.0, %v336
        %v338 = vmul.f32 %v335, %v337
        %v339 = vadd.f32 %v335, %v338
        %vm340 = vweird.f32 %v334
        %vm341 = vweird.f32 %v335
        %vm342 = vmor %vm340, %vm341
        %v343 = vsel %vm342, %v335, %v339
        %v344 = vand.u32 2147483647, %v334
        %vm345 = vcmp.eq.f32.partialorder %v344, 8.507059e+37
        %v346 = vand.u32 %v334, 2147483648
        %v347 = vor.u32 1.1754944e-38, %v346
        %v348 = vsel %vm345, %v347, %v343
        %v349 = vmul.f32 1.0, %v348
        %v350 = vperm.slane %v349, 0
        %v351 = vlaneseq
        %v352 = vshrl.u32 %v351, 7
        %354 = vset.pattern.permute.xlu0 %v352
        %355 = vperm.xlu0 %354, %v350
        %v356 = vpop.permute.xlu0 %355
        %v359 = vunpack.c.l.s4 839922192
        %v360 = vunpack.c.0.s8 %v359
        %v361 = vperm.slane %v356, %v360
        %v363 = vmul.f32 %v243, %v361
        %364 = vst [vmem:[%s242] sm:$0xff] %v363
        %s365 = sand.u32 %s140, 1
        %s366 = scalar_lea.sflag [#allocation4], %s365
        %s367 = sand.u32 %s140, 1
        %s368 = smul.addr %s367, 8
        %s369 = scalar_lea.vmem [#allocation5], %s368
        // Predicated region
        $region45: #{tpu_custom_call.1} parent=39 // pred_check
          %p370 = pneg %p150
        $region46: #{tpu_custom_call.1} parent=39 // pred_check_branch
          %372 = sbr.rel (%p370) target = $region48
        $region47: #{tpu_custom_call.1} parent=39 // pred_region
          %374 = vsyncadd %s366, 0
          %s375 = smul.addr %s22, 2
          %s376 = smul.addr %s375, 4
          %s377 = scalar_lea.hbm %s5, %s376
          %s379 = sshll.u32 %s369, 4
          %s380 = int_to_ptr.vmem [resolvable:$true] %s379
          %s381 = sshll.u32 %s377, 4
          %s382 = int_to_ptr.hbm [resolvable:$true] %s381
          %384 = dma.vmem_to_hbm [thread:$0]  %s380, 128, %s382, %s366
        $region48: #{tpu_custom_call.1} parent=39 // pred_fallthru
          _
      $region40: #{tpu_custom_call.1} parent=5 // pred_fallthru
        _
      %p385 = scmp.le.s32.totalorder 2, %s17
      // Predicated region
      $region49: #{tpu_custom_call.1} parent=5 // pred_check
        %p386 = pneg %p385
      $region50: #{tpu_custom_call.1} parent=5 // pred_check_branch
        %388 = sbr.rel (%p386) target = $region52
      $region51: #{tpu_custom_call.1} parent=5 // pred_region
        %s389 = ssub.s32 %s17, 2
        // Predicated region
        $region53: #{tpu_custom_call.1} parent=51 // pred_check
          %p390 = pneg %p156
        $region54: #{tpu_custom_call.1} parent=51 // pred_check_branch
          %392 = sbr.rel (%p390) target = $region56
        $region55: #{tpu_custom_call.1} parent=51 // pred_region
          %s393 = sand.u32 %s141, 1
          %s394 = scalar_lea.sflag [#allocation4], %s393
          %s395 = sand.u32 %s141, 1
          %s396 = smul.addr %s395, 8
          %s397 = scalar_lea.vmem [#allocation5], %s396
          %399 = dma.done %s394, 128
        $region56: #{tpu_custom_call.1} parent=51 // pred_fallthru
          _
      $region52: #{tpu_custom_call.1} parent=5 // pred_fallthru
        _
    $region6: #{tpu_custom_call.1} parent=1 // loop_footer
      %s21 = sadd.s32 1, %s17
    $region7: #{tpu_custom_call.1} parent=1 // loop_footer_branch
      %16 = sbr.rel target = $region3
    $region8: #{tpu_custom_call.1} parent=1 // loop_exit
      _
    %400 = vsyncpa [#allocation3], 1
    %s401 = scalar_lea.sflag [#allocation3], 1
    %402 = vsyncpa %s401, 1
    %403 = vsyncpa [#allocation4], 1
    %s404 = scalar_lea.sflag [#allocation4], 1
    %405 = vsyncpa %s404, 1

</llo_original>
